<compile_context>
chip_gen: v7x
topology: tpu7x:2x2x1
jax: 0.10.0
libtpu: 0.0.40
codegen_flags: <defaults>
</compile_context>

<pallas_src>
import functools

import jax
import jax.numpy as jnp
from jax.experimental import pallas as pl
from jax.experimental.pallas import tpu as pltpu


def _round_up(a, b):
    return (a + b - 1) // b * b


def _mean_max_kernel(x_ref, o_ref, sum_acc, max_acc, *, inv_hw, thw, hw):
    """One (TR, THW) tile: accumulate sum & max over the HW (lane) axis."""
    k = pl.program_id(1)
    nk = pl.num_programs(1)

    @pl.when(k == 0)
    def _init():
        sum_acc[...] = jnp.zeros_like(sum_acc)
        max_acc[...] = jnp.full_like(max_acc, -jnp.inf)

    # Single load of the tile, shared by both reductions; accumulate in f32.
    x = x_ref[...].astype(jnp.float32)

    def _accumulate(x_sum, x_max):
        sum_acc[...] += jnp.sum(x_sum, axis=-1, keepdims=True)
        max_acc[...] = jnp.maximum(max_acc[...],
                                   jnp.max(x_max, axis=-1, keepdims=True))

    if hw % thw == 0:
        # All HW blocks are fully valid: mask-free steady state.
        _accumulate(x, x)
    else:
        # Only the LAST HW block has out-of-range lanes.  The wrapper does not
        # pad, so those lanes are undefined: mask sum -> 0 and max -> -inf
        # there, and keep every earlier block mask-free.
        @pl.when(k < nk - 1)
        def _full_block():
            _accumulate(x, x)

        @pl.when(k == nk - 1)
        def _edge_block():
            n_valid = hw - (nk - 1) * thw
            valid = jax.lax.broadcasted_iota(jnp.int32, x.shape, 1) < n_valid
            _accumulate(jnp.where(valid, x, 0.0),
                        jnp.where(valid, x, -jnp.inf))

    @pl.when(k == nk - 1)
    def _finalize():
        # Divide by the TRUE H*W only here, never per block.
        o_ref[...] = (sum_acc[...] * inv_hw + max_acc[...]).astype(o_ref.dtype)


def mean_max_pooling(x, *, tr=None, thw=None):
    """MeanMaxPooling with output_size=1 on NCHW input -> (B, C, 1, 1)."""
    B, C, H, W = x.shape
    R = B * C
    HW = H * W
    itemsize = jnp.dtype(x.dtype).itemsize
    # Sublane packing: 8 rows for 4-byte, 16 for 2-byte, 32 for 1-byte dtypes.
    sub = {4: 8, 2: 16, 1: 32}.get(itemsize, 8)

    # ---- generation-aware budgets ------------------------------------------
    try:
        vmem_cap = int(pltpu.get_tpu_info().vmem_capacity_bytes)
    except Exception:
        vmem_cap = 64 * 1024 * 1024           # conservative: assume v7x-sized VMEM
    small_vmem = vmem_cap <= 96 * 1024 * 1024  # v7x: 64 MiB per TensorCore
    tile_target = (4 if small_vmem else 8) * 1024 * 1024   # bytes per input tile
    max_thw = 4096 if small_vmem else 8192                  # 128-aligned lane tile

    # ---- tile selection -----------------------------------------------------
    if thw is None:
        if sub * HW * itemsize <= tile_target:
            # Full spatial extent per block (block dim == array dim is always
            # legal, even for HW like 49); DMA stays fully contiguous and the
            # HW grid axis collapses to 1 -> no masking anywhere.
            thw = HW
        else:
            thw = max_thw     # multiple of 128; tail block masked in-kernel
    if tr is None:
        rows_target = max(1, tile_target // max(1, thw * itemsize))
        tr = _round_up(min(rows_target, R), sub)
        if small_vmem and R >= 2 * sub:
            # v7x has 2 TensorCores: keep >= 2 row tiles so the "parallel"
            # row axis actually shards across both cores.
            tr = min(tr, _round_up(-(-R // 2), sub))
    tr = max(sub, _round_up(tr, sub))

    xf = x.reshape(R, HW)     # contiguous collapse: metadata only, no HBM copy
    grid = (pl.cdiv(R, tr), pl.cdiv(HW, thw))

    # Explicit VMEM budget: double-buffered input tile (2 * tile_bytes) plus
    # headroom for scratch/output/internal, clamped per generation.
    tile_bytes = tr * thw * itemsize
    vmem_cap_limit = (48 if small_vmem else 96) * 1024 * 1024
    vmem_limit = int(min(vmem_cap_limit,
                         max(16 * 1024 * 1024, 3 * tile_bytes + (4 << 20))))

    cost = pl.CostEstimate(
        flops=2 * R * HW,                     # one add + one compare per element
        transcendentals=0,
        bytes_accessed=R * HW * itemsize + R * itemsize,
    )

    kernel = functools.partial(_mean_max_kernel, inv_hw=1.0 / HW, thw=thw, hw=HW)

    # NOTE(perf): the (R, 1) output lowers to masked stores; it is a handful of
    # bytes per row tile -- the kernel is HBM-read bound and compute is hidden
    # under the DMA on all generations.
    out = pl.pallas_call(
        kernel,
        out_shape=jax.ShapeDtypeStruct((R, 1), x.dtype),
        grid_spec=pltpu.PrefetchScalarGridSpec(
            num_scalar_prefetch=0,
            grid=grid,
            in_specs=[pl.BlockSpec((tr, thw), lambda r, k: (r, k))],
            out_specs=pl.BlockSpec((tr, 1), lambda r, k: (r, 0)),
            scratch_shapes=[pltpu.VMEM((tr, 1), jnp.float32),    # running sum
                            pltpu.VMEM((tr, 1), jnp.float32)],   # running max
        ),
        compiler_params=pltpu.CompilerParams(
            dimension_semantics=("parallel", "arbitrary"),
            vmem_limit_bytes=vmem_limit,
        ),
        cost_estimate=cost,
    )(xf)

    return out.reshape(B, C, 1, 1)


def _reference(x):
    return (jnp.mean(x, axis=(2, 3), keepdims=True)
            + jnp.max(x, axis=(2, 3), keepdims=True))


if __name__ == "__main__":
    key = jax.random.PRNGKey(0)
    k0, k1, k2 = jax.random.split(key, 3)

    # Small NCHW shape consistent with the module.
    B, C, H, W = 2, 4, 16, 16
    x = jax.random.normal(k0, (B, C, H, W), dtype=jnp.float32)
    y = mean_max_pooling(x)
    jax.block_until_ready(y)
    assert y.shape == (B, C, 1, 1), y.shape
    assert jnp.allclose(y, _reference(x), atol=1e-5, rtol=1e-5), "mismatch vs reference"

    # Multi-step reduction + last-block lane-masking path (HW = 400 is not a
    # multiple of the forced thw=128) on all-negative data, so any bug in the
    # unpadded edge-block handling (sum or max) would surface.
    x2 = jax.random.normal(k1, (2, 4, 20, 20), dtype=jnp.float32) - 5.0
    y2 = mean_max_pooling(x2, tr=8, thw=128)
    jax.block_until_ready(y2)
    assert jnp.allclose(y2, _reference(x2), atol=1e-5, rtol=1e-5), "mismatch (tiled/masked path)"

    # Canonical CNN global-pool case: 7x7 spatial (HW = 49, full-dim block, no
    # padding anywhere) with a row count that is not a multiple of 8, so the
    # row grid over-covers and the tail rows are discarded.
    x3 = jax.random.normal(k2, (3, 5, 7, 7), dtype=jnp.float32) - 3.0
    y3 = mean_max_pooling(x3)
    jax.block_until_ready(y3)
    assert y3.shape == (3, 5, 1, 1), y3.shape
    assert jnp.allclose(y3, _reference(x3), atol=1e-5, rtol=1e-5), "mismatch (7x7 path)"

    print("KERNEL_OK")
</pallas_src>

<mosaic_0001>
module attributes {stable_mosaic.version = 11 : i64} {
  func.func @_mean_max_kernel(%arg0: i32, %arg1: i32, %arg2: memref<8x256xf32, #tpu.memory_space<vmem>>, %arg3: memref<8x1xf32, #tpu.memory_space<vmem>>, %arg4: memref<8x1xf32, #tpu.memory_space<vmem>>, %arg5: memref<8x1xf32, #tpu.memory_space<vmem>>) attributes {dimension_semantics = [#tpu.dimension_semantics<parallel>, #tpu.dimension_semantics<arbitrary>], iteration_bounds = array<i64: 1, 1>, scalar_prefetch = 0 : i64, scratch_operands = 2 : i64, tpu.core_type = #tpu.core_type<tc>, window_params = [{transform_indices = @transform_0, window_bounds = array<i64: 8, 256>}, {transform_indices = @transform_1, window_bounds = array<i64: 8, 1>}]} {
    %c0_i32 = arith.constant 0 : i32
    %0 = arith.cmpi eq, %arg1, %c0_i32 : i32
    %1 = arith.extui %0 : i1 to i32
    %c0_i32_0 = arith.constant 0 : i32
    %2 = arith.cmpi ne, %1, %c0_i32_0 : i32
    scf.if %2 {
      %cst_13 = arith.constant 0.000000e+00 : f32
      %17 = vector.broadcast %cst_13 : f32 to vector<8x1xf32>
      %c0_14 = arith.constant 0 : index
      %c0_15 = arith.constant 0 : index
      %18 = vector.load %arg4[%c0_14, %c0_15] : memref<8x1xf32, #tpu.memory_space<vmem>>, vector<8x1xf32>
      tpu.vector_store %arg4[%c0_14, %c0_15], %17 {strides = array<i32>} : memref<8x1xf32, #tpu.memory_space<vmem>>, vector<8x1xf32>,
      %cst_16 = arith.constant 0xFF800000 : f32
      %19 = vector.broadcast %cst_16 : f32 to vector<8x1xf32>
      %c0_17 = arith.constant 0 : index
      %c0_18 = arith.constant 0 : index
      %20 = vector.load %arg5[%c0_17, %c0_18] : memref<8x1xf32, #tpu.memory_space<vmem>>, vector<8x1xf32>
      tpu.vector_store %arg5[%c0_17, %c0_18], %19 {strides = array<i32>} : memref<8x1xf32, #tpu.memory_space<vmem>>, vector<8x1xf32>,
    } else {
    }
    %c0 = arith.constant 0 : index
    %c0_1 = arith.constant 0 : index
    %3 = vector.load %arg2[%c0, %c0_1] : memref<8x256xf32, #tpu.memory_space<vmem>>, vector<8x256xf32>
    %c0_2 = arith.constant 0 : index
    %c0_3 = arith.constant 0 : index
    %4 = vector.load %arg4[%c0_2, %c0_3] : memref<8x1xf32, #tpu.memory_space<vmem>>, vector<8x1xf32>
    %cst = arith.constant dense<0.000000e+00> : vector<8xf32>
    %5 = vector.multi_reduction <add>, %3, %cst [1] : vector<8x256xf32> to vector<8xf32>
    %6 = vector.shape_cast %5 : vector<8xf32> to vector<8x1xf32>
    %7 = arith.addf %4, %6 : vector<8x1xf32>
    %c0_4 = arith.constant 0 : index
    %c0_5 = arith.constant 0 : index
    %8 = vector.load %arg4[%c0_4, %c0_5] : memref<8x1xf32, #tpu.memory_space<vmem>>, vector<8x1xf32>
    tpu.vector_store %arg4[%c0_4, %c0_5], %7 {strides = array<i32>} : memref<8x1xf32, #tpu.memory_space<vmem>>, vector<8x1xf32>,
    %c0_6 = arith.constant 0 : index
    %c0_7 = arith.constant 0 : index
    %9 = vector.load %arg5[%c0_6, %c0_7] : memref<8x1xf32, #tpu.memory_space<vmem>>, vector<8x1xf32>
    %cst_8 = arith.constant dense<0xFF800000> : vector<8xf32>
    %10 = vector.multi_reduction <maximumf>, %3, %cst_8 [1] : vector<8x256xf32> to vector<8xf32>
    %11 = vector.shape_cast %10 : vector<8xf32> to vector<8x1xf32>
    %12 = arith.maximumf %9, %11 : vector<8x1xf32>
    %c0_9 = arith.constant 0 : index
    %c0_10 = arith.constant 0 : index
    %13 = vector.load %arg5[%c0_9, %c0_10] : memref<8x1xf32, #tpu.memory_space<vmem>>, vector<8x1xf32>
    tpu.vector_store %arg5[%c0_9, %c0_10], %12 {strides = array<i32>} : memref<8x1xf32, #tpu.memory_space<vmem>>, vector<8x1xf32>,
    %c0_i32_11 = arith.constant 0 : i32
    %14 = arith.cmpi eq, %arg1, %c0_i32_11 : i32
    %15 = arith.extui %14 : i1 to i32
    %c0_i32_12 = arith.constant 0 : i32
    %16 = arith.cmpi ne, %15, %c0_i32_12 : i32
    scf.if %16 {
      %c0_13 = arith.constant 0 : index
      %c0_14 = arith.constant 0 : index
      %17 = vector.load %arg4[%c0_13, %c0_14] : memref<8x1xf32, #tpu.memory_space<vmem>>, vector<8x1xf32>
      %cst_15 = arith.constant 3.906250e-03 : f32
      %18 = vector.broadcast %cst_15 : f32 to vector<8x1xf32>
      %19 = arith.mulf %17, %18 : vector<8x1xf32>
      %c0_16 = arith.constant 0 : index
      %c0_17 = arith.constant 0 : index
      %20 = vector.load %arg5[%c0_16, %c0_17] : memref<8x1xf32, #tpu.memory_space<vmem>>, vector<8x1xf32>
      %21 = arith.addf %19, %20 : vector<8x1xf32>
      %c0_18 = arith.constant 0 : index
      %c0_19 = arith.constant 0 : index
      %22 = vector.load %arg3[%c0_18, %c0_19] : memref<8x1xf32, #tpu.memory_space<vmem>>, vector<8x1xf32>
      tpu.vector_store %arg3[%c0_18, %c0_19], %21 {strides = array<i32>} : memref<8x1xf32, #tpu.memory_space<vmem>>, vector<8x1xf32>,
    } else {
    }
    return
  }
  func.func @transform_0(%arg0: i32, %arg1: i32) -> (i32, i32) {
    %c0_i32 = arith.constant 0 : i32
    return %arg0, %arg1 : i32, i32
  }
  func.func @transform_1(%arg0: i32, %arg1: i32) -> (i32, i32) {
    %c0_i32 = arith.constant 0 : i32
    %c0_i32_0 = arith.constant 0 : i32
    return %arg0, %c0_i32 : i32, i32
  }
}

</mosaic_0001>

<llo_original>
// kernel: tpu_custom_call.1
$region0: #{tpu_custom_call.1}
  #allocation0 [shape = 'u32[]', space=smem, size = 0x4, offset = 0x4, fixed_abs, tag = 'smem constant byte address 0x4 - core index']
  #allocation1 [shape = 'u32[144,128]{1,0:T(1,128)}', space=vmem, size = 0x12000, scoped, tag = 'internal scratch']
  #allocation2 [shape = 'f32[8,1]{1,0:T(8,128)}', space=vmem, size = 0x1000, scoped, tag = 'scratch operand']
  #allocation3 [shape = 'f32[8,1]{1,0:T(8,128)}', space=vmem, size = 0x1000, scoped, tag = 'scratch operand']
  %s0 = inlined_call_operand.hbm [shape: f32[8,256], index: 0, kind: input, shape index: {}]
  %s1 = inlined_call_operand.vmem [shape: f32[8,1], index: 1, kind: output, shape index: {}]
  %s2 = sld [smem:[#allocation0]]
  $region26: #{tpu_custom_call.1} parent=0
    _
  %s4 = ssub.s32 1, %s2
  %s5 = scalar_select 0, %s4, %s2
  $region1: #{tpu_custom_call.1} parent=0
    #allocation4 [shape = 'u8[8192]{0}', space=vmem, size = 0x2000, scoped, tag = 'input window, operand 0, single buffered']
    #allocation5 [shape = 's32[1]{0}', space=sflag, size = 0x4, scoped, tag = 'scoped memory for tpu_custom_call.1']
    %6 = vsyncpa [#allocation5], 0
    // Predicated region
    $region2: #{tpu_custom_call.1} parent=1 // pred_check
      _
    $region3: #{tpu_custom_call.1} parent=1 // pred_check_branch
      %8 = sbr.rel (0) target = $region5
    $region4: #{tpu_custom_call.1} parent=1 // pred_region
      %s10 = ssub.s32 256, 256
      %11 = vsyncadd [#allocation5], %s10
      %s13 = sshll.u32 [#allocation4], 4
      %s14 = int_to_ptr.vmem [resolvable:$true] %s13
      %16 = dma.hbm_to_vmem [thread:$0]  %s0, 256, %s14, [#allocation5]
    $region5: #{tpu_custom_call.1} parent=1 // pred_fallthru
      _
    // Predicated region
    $region6: #{tpu_custom_call.1} parent=1 // pred_check
      _
    $region7: #{tpu_custom_call.1} parent=1 // pred_check_branch
      %18 = sbr.rel (0) target = $region9
    $region8: #{tpu_custom_call.1} parent=1 // pred_region
      %19 = dma.done [#allocation5], 256
    $region9: #{tpu_custom_call.1} parent=1 // pred_fallthru
      _
    %p20 = scmp.eq.s32.totalorder 0, 0
    // Predicated region
    $region10: #{tpu_custom_call.1} parent=1 // pred_check
      %p21 = pneg %p20
    $region11: #{tpu_custom_call.1} parent=1 // pred_check_branch
      %23 = sbr.rel (%p21) target = $region13
    $region12: #{tpu_custom_call.1} parent=1 // pred_region
      %vm24 = vcmask 7168
      %25 = vst.msk [vmem:[#allocation2] sm:$0xff] %vm24, 0.0
      %26 = vst.msk [vmem:[#allocation3] sm:$0xff] %vm24, -inf
    $region13: #{tpu_custom_call.1} parent=1 // pred_fallthru
      _
    %v27 = vld [vmem:[#allocation4] sm:$0xff]
    %v28 = vld [vmem:[#allocation4 + $0x8] sm:$0xff]
    %v29 = vld [vmem:[#allocation2] sm:$0xff]
    %v30 = vadd.f32 %v27, %v28
    %31 = vadd.xlane.f32.xlu0 %v30
    %v32 = vpop.xlane.xlu0 %31
    %v33 = vadd.f32 %v29, %v32
    %vm34 = vcmask 7168
    %35 = vst.msk [vmem:[#allocation2] sm:$0xff] %vm34, %v33
    %v36 = vld [vmem:[#allocation3] sm:$0xff]
    %v37 = vmax.f32 %v27, %v28
    %38 = vmax.xlane.f32.xlu0 %v37
    %v39 = vpop.xlane.xlu0 %38
    %v40 = vmax.f32 %v36, %v39
    %41 = vst.msk [vmem:[#allocation3] sm:$0xff] %vm34, %v40
    // Predicated region
    $region14: #{tpu_custom_call.1} parent=1 // pred_check
      %p42 = pneg %p20
    $region15: #{tpu_custom_call.1} parent=1 // pred_check_branch
      %44 = sbr.rel (%p42) target = $region17
    $region16: #{tpu_custom_call.1} parent=1 // pred_region
      %v45 = vld [vmem:[#allocation2] sm:$0xff]
      %v46 = vmul.f32 %v45, 0.00390625
      %v47 = vld [vmem:[#allocation3] sm:$0xff]
      %v48 = vadd.f32 %v46, %v47
      %49 = vst.msk [vmem:[%s1] sm:$0xff] %vm34, %v48
    $region17: #{tpu_custom_call.1} parent=1 // pred_fallthru
      _
    // Predicated region
    $region18: #{tpu_custom_call.1} parent=1 // pred_check
      _
    $region19: #{tpu_custom_call.1} parent=1 // pred_check_branch
      %51 = sbr.rel (0) target = $region21
    $region20: #{tpu_custom_call.1} parent=1 // pred_region
      _
    $region21: #{tpu_custom_call.1} parent=1 // pred_fallthru
      _
    // Predicated region
    $region22: #{tpu_custom_call.1} parent=1 // pred_check
      _
    $region23: #{tpu_custom_call.1} parent=1 // pred_check_branch
      %53 = sbr.rel (0) target = $region25
    $region24: #{tpu_custom_call.1} parent=1 // pred_region
      _
    $region25: #{tpu_custom_call.1} parent=1 // pred_fallthru
      _
    %54 = vsyncpa [#allocation5], 1

</llo_original>
